<compile_context>
chip_gen: v7x
topology: tpu7x:2x2x1
jax: 0.10.0
libtpu: 0.0.40
codegen_flags: <defaults>
</compile_context>

<pallas_src>
import functools
import math

import jax
import jax.numpy as jnp
import numpy as np
from jax import lax
from jax.experimental import pallas as pl
from jax.experimental.pallas import tpu as pltpu

GATHER_SEMS = 16  # DMA semaphores shared round-robin by the gather rows.


def _round_up(x, m):
    return (x + m - 1) // m * m


# ----------------------------------------------------------------------------
# Kernel 1: embedding via DMA gather + time linear + sqrt(d_model) scale.
#   tok ids (n_rows,) int32 scalar-prefetched; emb table (V,H) left in HBM;
#   times (n_rows,1), wt/bt (1,H) -> out (n_rows,H), tiled over rows.
# ----------------------------------------------------------------------------
def _embedding_kernel(tok_ref, time_ref, wt_ref, bt_ref, emb_hbm, out_ref,
                      gath_ref, sems, *, scale, tn):
    base = pl.program_id(0) * tn

    @pl.loop(0, tn)
    def _(r):
        idx = tok_ref[base + r]
        pltpu.make_async_copy(emb_hbm.at[pl.ds(idx, 1)],
                              gath_ref.at[pl.ds(r, 1)],
                              sems.at[r % GATHER_SEMS]).start()

    # Time head (VPU broadcast multiply) overlaps with the gather DMAs.
    tfeat = time_ref[...] * wt_ref[...] + bt_ref[...]          # (tn, H)

    @pl.loop(0, tn)
    def _(r):
        pltpu.make_async_copy(emb_hbm.at[pl.ds(0, 1)],
                              gath_ref.at[pl.ds(r, 1)],
                              sems.at[r % GATHER_SEMS]).wait()

    out_ref[...] = (gath_ref[...] + tfeat) * scale


def embedding_forward(tok_flat, time_flat, emb_table, wt, bt, *, tn):
    n_rows = tok_flat.shape[0]
    h = emb_table.shape[1]
    grid_spec = pltpu.PrefetchScalarGridSpec(
        num_scalar_prefetch=1,
        grid=(n_rows // tn,),
        in_specs=[
            pl.BlockSpec((tn, 1), lambda i, tok: (i, 0)),
            pl.BlockSpec((1, h), lambda i, tok: (0, 0)),
            pl.BlockSpec((1, h), lambda i, tok: (0, 0)),
            pl.BlockSpec(memory_space=pl.ANY),                 # table stays in HBM
        ],
        out_specs=pl.BlockSpec((tn, h), lambda i, tok: (i, 0)),
        scratch_shapes=[pltpu.VMEM((tn, h), jnp.float32),
                        pltpu.SemaphoreType.DMA((GATHER_SEMS,))],
    )
    return pl.pallas_call(
        functools.partial(_embedding_kernel, scale=float(math.sqrt(h)), tn=tn),
        out_shape=jax.ShapeDtypeStruct((n_rows, h), jnp.float32),
        grid_spec=grid_spec,
        compiler_params=pltpu.CompilerParams(
            dimension_semantics=("parallel",),
            vmem_limit_bytes=32 * 1024 * 1024),
    )(tok_flat, time_flat, wt, bt, emb_table)


# ----------------------------------------------------------------------------
# Kernel 2: fused multi-layer LSTM stack, time-major (Sp, Bp, H), batch-block
# grid.  Gate layout (i, f, o, g), each gate padded to a 128-lane stride Hg.
#   x (Sp,Bp,H); wih/whh (L,H,4Hg); b (L,1,4Hg) -> y (Sp,Bp,H)
#   scratch: act (Sp,tb,H) ping-pong buffer, gx (chunk*tb,4Hg) chunked input proj.
# ----------------------------------------------------------------------------
def _lstm_stack_kernel(x_ref, wih_ref, whh_ref, b_ref, y_ref, act_ref, gx_ref,
                       *, chunk, gate_stride):
    sp, tb, h = x_ref.shape
    num_layers = wih_ref.shape[0]
    hg = gate_stride
    n_chunks = sp // chunk

    src_ref = x_ref
    for layer in range(num_layers):
        # Ping-pong: the last layer writes straight into the output block.
        dst_ref = y_ref if (num_layers - 1 - layer) % 2 == 0 else act_ref

        def chunk_body(ck, carry, src=src_ref, dst=dst_ref, layer=layer):
            t0 = pl.multiple_of(ck * chunk, chunk)
            # Hoisted input projection for `chunk` time steps: one big MXU pass.
            wih_l = wih_ref[layer]                              # ref slice per chunk
            xs = src[pl.ds(t0, chunk)].reshape(chunk * tb, h)
            gx_ref[...] = jnp.dot(xs.astype(wih_l.dtype), wih_l,
                                  preferred_element_type=jnp.float32) + b_ref[layer]

            def step(s, hc, dst=dst, layer=layer, t0=t0):
                h_prev, c_prev = hc
                off = pl.multiple_of(s * tb, tb)
                whh_l = whh_ref[layer]                          # ref slice per step
                gates = gx_ref[pl.ds(off, tb), :] + jnp.dot(
                    h_prev.astype(whh_l.dtype), whh_l,
                    preferred_element_type=jnp.float32)
                # Each gate starts at a lane-aligned column (multiple of 128).
                i_g = jax.nn.sigmoid(gates[:, 0 * hg:0 * hg + h])
                f_g = jax.nn.sigmoid(gates[:, 1 * hg:1 * hg + h])
                o_g = jax.nn.sigmoid(gates[:, 2 * hg:2 * hg + h])
                g_g = jnp.tanh(gates[:, 3 * hg:3 * hg + h])
                c_new = f_g * c_prev + i_g * g_g
                h_new = o_g * jnp.tanh(c_new)
                dst[t0 + s] = h_new
                return (h_new, c_new)

            return lax.fori_loop(0, chunk, step, carry, unroll=4)

        h0 = jnp.zeros((tb, h), jnp.float32)
        c0 = jnp.zeros((tb, h), jnp.float32)
        lax.fori_loop(0, n_chunks, chunk_body, (h0, c0))
        src_ref = dst_ref
    # TODO(synk): overlap layer l+1's weight DMA (manual double-buffer from HBM)
    # with layer l's recurrence for large H / many layers.


def lstm_stack_forward(x_tm, wih, whh, b, *, chunk, gate_stride, batch_blocks=1):
    sp, bp, h = x_tm.shape
    tb = bp // batch_blocks
    return pl.pallas_call(
        functools.partial(_lstm_stack_kernel, chunk=chunk,
                          gate_stride=gate_stride),
        out_shape=jax.ShapeDtypeStruct((sp, bp, h), jnp.float32),
        grid=(batch_blocks,),
        in_specs=[
            pl.BlockSpec((sp, tb, h), lambda i: (0, i, 0)),
            pl.BlockSpec(wih.shape, lambda i: (0, 0, 0)),
            pl.BlockSpec(whh.shape, lambda i: (0, 0, 0)),
            pl.BlockSpec(b.shape, lambda i: (0, 0, 0)),
        ],
        out_specs=pl.BlockSpec((sp, tb, h), lambda i: (0, i, 0)),
        scratch_shapes=[
            pltpu.VMEM((sp, tb, h), jnp.float32),               # ping-pong acts
            pltpu.VMEM((chunk * tb, 4 * gate_stride), jnp.float32),  # chunked gx
        ],
        compiler_params=pltpu.CompilerParams(
            dimension_semantics=("parallel",),
            vmem_limit_bytes=32 * 1024 * 1024),
    )(x_tm, wih, whh, b)


# ----------------------------------------------------------------------------
# Kernel 3: readout, activity + time heads folded into one lane-dense slab.
# Column axis is the OUTER grid dim so each (H, tv) weight block is DMA'd once.
# ----------------------------------------------------------------------------
def _readout_kernel(h_ref, w_ref, b_ref, out_ref):
    out_ref[...] = jnp.dot(h_ref[...], w_ref[...],
                           preferred_element_type=jnp.float32) + b_ref[...]


def readout_forward(h_flat, w_read, b_read, *, tn):
    n_rows, h = h_flat.shape
    vp = w_read.shape[1]
    tv = min(vp, 512)
    while vp % tv:
        tv -= 128
    return pl.pallas_call(
        _readout_kernel,
        out_shape=jax.ShapeDtypeStruct((n_rows, vp), jnp.float32),
        grid=(vp // tv, n_rows // tn),          # columns outer, rows inner
        in_specs=[
            pl.BlockSpec((tn, h), lambda c, r: (r, 0)),
            pl.BlockSpec((h, tv), lambda c, r: (0, c)),
            pl.BlockSpec((1, tv), lambda c, r: (0, c)),
        ],
        out_specs=pl.BlockSpec((tn, tv), lambda c, r: (r, c)),
        compiler_params=pltpu.CompilerParams(
            dimension_semantics=("parallel", "parallel"),
            vmem_limit_bytes=32 * 1024 * 1024),
    )(h_flat, w_read, b_read)


# ----------------------------------------------------------------------------
# Parameter init + full forward
# ----------------------------------------------------------------------------
def init_params(key, hidden, vocab, num_layers, pad_token,
                mxu_dtype=jnp.float32):
    """mxu_dtype=jnp.bfloat16 halves LSTM weight VMEM/DMA and doubles MXU
    throughput on v6e/v7x (f32 accumulation, f32 gate math kept); the demo uses
    f32 so the tight reference check passes bit-for-bit-ish."""
    h, v = hidden, vocab
    hg = _round_up(h, 128)            # per-gate column stride (lane aligned)
    vp_out = _round_up(v + 1, 128)
    keys = iter(jax.random.split(key, 8 + 4 * num_layers))
    p = {"hidden": h, "vocab": v, "pad_token": pad_token, "gate_stride": hg}

    emb = 0.1 * jax.random.normal(next(keys), (v, h), jnp.float32)
    p["emb_table"] = emb.at[pad_token].set(0.0)               # padding_idx row = 0
    p["wt_emb"] = 0.1 * jax.random.normal(next(keys), (1, h), jnp.float32)
    p["bt_emb"] = 0.1 * jax.random.normal(next(keys), (1, h), jnp.float32)

    def pad_gates(w):                 # (..., 4H) -> (..., 4*Hg), gates lane-aligned
        out = jnp.zeros(w.shape[:-1] + (4 * hg,), jnp.float32)
        for g in range(4):
            out = out.at[..., g * hg:g * hg + h].set(w[..., g * h:(g + 1) * h])
        return out

    # LSTM weights in gate layout (i, f, o, g); b = b_ih + b_hh.
    wih, whh, bs = [], [], []
    for _ in range(num_layers):
        wih.append(pad_gates(0.1 * jax.random.normal(next(keys), (h, 4 * h),
                                                     jnp.float32)))
        whh.append(pad_gates(0.1 * jax.random.normal(next(keys), (h, 4 * h),
                                                     jnp.float32)))
        b_ih = 0.1 * jax.random.normal(next(keys), (1, 4 * h), jnp.float32)
        b_hh = 0.1 * jax.random.normal(next(keys), (1, 4 * h), jnp.float32)
        bs.append(pad_gates(b_ih + b_hh))
    p["wih"] = jnp.stack(wih).astype(mxu_dtype)               # (L, H, 4Hg)
    p["whh"] = jnp.stack(whh).astype(mxu_dtype)               # (L, H, 4Hg)
    p["b"] = jnp.stack(bs)                                    # (L, 1, 4Hg) f32

    # Readout: columns [0:V] = activity head, column V = time head, rest zero.
    wa = 0.1 * jax.random.normal(next(keys), (h, v), jnp.float32)
    ba = 0.1 * jax.random.normal(next(keys), (1, v), jnp.float32)
    wtr = 0.1 * jax.random.normal(next(keys), (h, 1), jnp.float32)
    btr = 0.1 * jax.random.normal(next(keys), (1, 1), jnp.float32)
    p["w_read"] = (jnp.zeros((h, vp_out), jnp.float32)
                   .at[:, :v].set(wa).at[:, v:v + 1].set(wtr))
    p["b_read"] = (jnp.zeros((1, vp_out), jnp.float32)
                   .at[:, :v].set(ba).at[:, v:v + 1].set(btr))
    return p


def sequential_decoder_forward(params, tokens, times):
    """tokens: (B, S, 1) int, times: (B, S, 1) float -> ((B,S,V), (B,S,1))."""
    b_sz, s_len, _ = tokens.shape
    v = params["vocab"]
    h = params["hidden"]
    hg = params["gate_stride"]

    bp = _round_up(b_sz, 8)                     # sublane-aligned batch
    sp = _round_up(s_len, 8)                    # time padded to the chunk size
    chunk = 16 if (sp % 16 == 0 and sp >= 16) else 8

    # Time-major padded layout; padded batch rows / trailing padded time steps
    # never influence the real outputs (batch rows are independent, padding is
    # appended after the real time steps).
    tok_tm = jnp.full((sp, bp), params["pad_token"], jnp.int32)
    tok_tm = tok_tm.at[:s_len, :b_sz].set(
        jnp.transpose(tokens[..., 0].astype(jnp.int32), (1, 0)))
    time_tm = jnp.zeros((sp, bp, 1), jnp.float32)
    time_tm = time_tm.at[:s_len, :b_sz].set(
        jnp.transpose(times.astype(jnp.float32), (1, 0, 2)))

    n = sp * bp
    tn = 512 if n >= 512 else n                 # row tile (multiple of 8)
    n_rows = _round_up(n, tn)
    tok_flat = jnp.full((n_rows,), params["pad_token"],
                        jnp.int32).at[:n].set(tok_tm.reshape(n))
    time_flat = jnp.zeros((n_rows, 1), jnp.float32).at[:n].set(
        time_tm.reshape(n, 1))

    x = embedding_forward(tok_flat, time_flat, params["emb_table"],
                          params["wt_emb"], params["bt_emb"], tn=tn)
    x_tm = x[:n].reshape(sp, bp, h)             # time-major (Sp, Bp, H)

    batch_blocks = 2 if bp % 16 == 0 else 1     # v7x: one block per TensorCore
    y = lstm_stack_forward(x_tm, params["wih"], params["whh"], params["b"],
                           chunk=chunk, gate_stride=hg,
                           batch_blocks=batch_blocks)

    h_rows = jnp.zeros((n_rows, h), jnp.float32).at[:n].set(y.reshape(n, h))
    out = readout_forward(h_rows, params["w_read"], params["b_read"], tn=tn)

    out = out[:n, :v + 1].reshape(sp, bp, v + 1)
    out = jnp.transpose(out, (1, 0, 2))[:b_sz, :s_len]        # (B, S, V+1)
    return out[..., :v], out[..., v:v + 1]
    # TODO(synk): dropout is identity here (dropout_prob=0.0 / eval semantics);
    # optional init_hidden argument not wired (zero initial state, as for None).


# Pure-JAX reference (same math, same padded gate layout) for a correctness check.
def reference_forward(params, tokens, times):
    h = params["hidden"]
    v = params["vocab"]
    hg = params["gate_stride"]
    emb = params["emb_table"][tokens[..., 0]]
    tfeat = times.astype(jnp.float32) * params["wt_emb"] + params["bt_emb"]
    x = (emb + tfeat) * math.sqrt(h)
    b_sz, s_len, _ = x.shape
    num_layers = params["wih"].shape[0]
    for layer in range(num_layers):
        wih = params["wih"][layer].astype(jnp.float32)
        whh = params["whh"][layer].astype(jnp.float32)
        b = params["b"][layer]
        hh = jnp.zeros((b_sz, h), jnp.float32)
        cc = jnp.zeros((b_sz, h), jnp.float32)
        ys = []
        for t in range(s_len):
            gates = x[:, t] @ wih + hh @ whh + b
            i_g = jax.nn.sigmoid(gates[:, 0 * hg:0 * hg + h])
            f_g = jax.nn.sigmoid(gates[:, 1 * hg:1 * hg + h])
            o_g = jax.nn.sigmoid(gates[:, 2 * hg:2 * hg + h])
            g_g = jnp.tanh(gates[:, 3 * hg:3 * hg + h])
            cc = f_g * cc + i_g * g_g
            hh = o_g * jnp.tanh(cc)
            ys.append(hh)
        x = jnp.stack(ys, axis=1)
    logits = x @ params["w_read"][:, :v] + params["b_read"][:, :v]
    tpred = x @ params["w_read"][:, v:v + 1] + params["b_read"][:, v:v + 1]
    return logits, tpred


if __name__ == "__main__":
    B, S, H = 2, 8, 32
    vocab_size, nb_special_tokens, pad_token = 12, 4, 0
    V = vocab_size + nb_special_tokens
    num_layers = 2

    key = jax.random.PRNGKey(0)
    k_p, k_tok, k_time = jax.random.split(key, 3)
    params = init_params(k_p, H, V, num_layers, pad_token)

    tokens = jax.random.randint(k_tok, (B, S, 1), 0, V, dtype=jnp.int32)
    times = jax.random.normal(k_time, (B, S, 1), jnp.float32)

    logits, tpred = sequential_decoder_forward(params, tokens, times)
    jax.block_until_ready((logits, tpred))

    ref_logits, ref_tpred = reference_forward(params, tokens, times)
    assert logits.shape == (B, S, V) and tpred.shape == (B, S, 1)
    np.testing.assert_allclose(np.asarray(logits), np.asarray(ref_logits),
                               rtol=2e-4, atol=2e-4)
    np.testing.assert_allclose(np.asarray(tpred), np.asarray(ref_tpred),
                               rtol=2e-4, atol=2e-4)
    print("KERNEL_OK")
</pallas_src>

<mosaic_0001>
module attributes {stable_mosaic.version = 11 : i64} {
  func.func @_embedding_kernel(%arg0: i32, %arg1: memref<64xi32, #tpu.memory_space<smem>>, %arg2: memref<64x1xf32, #tpu.memory_space<vmem>>, %arg3: memref<1x32xf32, #tpu.memory_space<vmem>>, %arg4: memref<1x32xf32, #tpu.memory_space<vmem>>, %arg5: memref<16x32xf32, #tpu.memory_space<any>>, %arg6: memref<64x32xf32, #tpu.memory_space<vmem>>, %arg7: memref<64x32xf32, #tpu.memory_space<vmem>>, %arg8: memref<16x!tpu.dma_semaphore, #tpu.memory_space<semaphore_mem>>) attributes {dimension_semantics = [#tpu.dimension_semantics<parallel>], iteration_bounds = array<i64: 1>, scalar_prefetch = 1 : i64, scratch_operands = 2 : i64, tpu.core_type = #tpu.core_type<tc>, window_params = [{transform_indices = @transform_0, window_bounds = array<i64: 64, 1>}, {pipeline_mode = #tpu.pipeline_mode<synchronous>, transform_indices = @transform_1, window_bounds = array<i64: 1, 32>}, {pipeline_mode = #tpu.pipeline_mode<synchronous>, transform_indices = @transform_2, window_bounds = array<i64: 1, 32>}, {}, {transform_indices = @transform_4, window_bounds = array<i64: 64, 32>}]} {
    %c64_i32 = arith.constant 64 : i32
    %0 = arith.muli %arg0, %c64_i32 : i32
    %c0_i32 = arith.constant 0 : i32
    %c64_i32_0 = arith.constant 64 : i32
    %1 = arith.addi %c0_i32, %c64_i32_0 : i32
    %c1_i32 = arith.constant 1 : i32
    scf.for %arg9 = %c0_i32 to %1 step %c1_i32  : i32 {
      %c1_i32_15 = arith.constant 1 : i32
      %16 = arith.muli %arg9, %c1_i32_15 : i32
      %c0_i32_16 = arith.constant 0 : i32
      %17 = arith.addi %c0_i32_16, %16 : i32
      %18 = arith.addi %0, %17 : i32
      %19 = arith.index_cast %18 : i32 to index
      %20 = memref.load %arg1[%19] : memref<64xi32, #tpu.memory_space<smem>>
      %c16_i32 = arith.constant 16 : i32
      %c0_i32_17 = arith.constant 0 : i32
      %21 = arith.cmpi eq, %c16_i32, %c0_i32_17 : i32
      %c1_i32_18 = arith.constant 1 : i32
      %22 = arith.select %21, %c1_i32_18, %c16_i32 : i32
      %23 = arith.remsi %17, %22 : i32
      %c0_i32_19 = arith.constant 0 : i32
      %24 = arith.cmpi ne, %23, %c0_i32_19 : i32
      %c0_i32_20 = arith.constant 0 : i32
      %25 = arith.cmpi slt, %23, %c0_i32_20 : i32
      %c0_i32_21 = arith.constant 0 : i32
      %26 = arith.cmpi slt, %22, %c0_i32_21 : i32
      %27 = arith.xori %25, %26 : i1
      %28 = arith.andi %27, %24 : i1
      %29 = arith.addi %23, %22 : i32
      %30 = arith.select %28, %29, %23 : i32
      %c0_i32_22 = arith.constant 0 : i32
      %31 = tpu.memref_slice %arg5[%20, %c0_i32_22] : memref<16x32xf32, #tpu.memory_space<any>> -> memref<1x32xf32, #tpu.memory_space<any>>
      %c0_i32_23 = arith.constant 0 : i32
      %32 = tpu.memref_slice %arg7[%17, %c0_i32_23] : memref<64x32xf32, #tpu.memory_space<vmem>> -> memref<1x32xf32, #tpu.memory_space<vmem>>
      %33 = tpu.memref_slice %arg8[%30] : memref<16x!tpu.dma_semaphore, #tpu.memory_space<semaphore_mem>> -> memref<1x!tpu.dma_semaphore, #tpu.memory_space<semaphore_mem>>
      %34 = tpu.memref_squeeze %33 : memref<1x!tpu.dma_semaphore, #tpu.memory_space<semaphore_mem>> -> memref<!tpu.dma_semaphore, #tpu.memory_space<semaphore_mem>>
      tpu.enqueue_dma source(%31 : memref<1x32xf32, #tpu.memory_space<any>>) target(%32 : memref<1x32xf32, #tpu.memory_space<vmem>>) target_semaphore(%34 : memref<!tpu.dma_semaphore, #tpu.memory_space<semaphore_mem>>)
    }
    %c64_i32_1 = arith.constant 64 : i32
    %c0 = arith.constant 0 : index
    %c0_2 = arith.constant 0 : index
    %2 = vector.load %arg2[%c0, %c0_2] : memref<64x1xf32, #tpu.memory_space<vmem>>, vector<64x1xf32>
    %c0_3 = arith.constant 0 : index
    %c0_4 = arith.constant 0 : index
    %3 = vector.load %arg3[%c0_3, %c0_4] : memref<1x32xf32, #tpu.memory_space<vmem>>, vector<1x32xf32>
    %4 = vector.broadcast %2 : vector<64x1xf32> to vector<64x32xf32>
    %5 = vector.broadcast %3 : vector<1x32xf32> to vector<64x32xf32>
    %6 = arith.mulf %4, %5 : vector<64x32xf32>
    %c0_5 = arith.constant 0 : index
    %c0_6 = arith.constant 0 : index
    %7 = vector.load %arg4[%c0_5, %c0_6] : memref<1x32xf32, #tpu.memory_space<vmem>>, vector<1x32xf32>
    %8 = vector.broadcast %7 : vector<1x32xf32> to vector<64x32xf32>
    %9 = arith.addf %6, %8 : vector<64x32xf32>
    %c0_i32_7 = arith.constant 0 : i32
    %c64_i32_8 = arith.constant 64 : i32
    %10 = arith.addi %c0_i32_7, %c64_i32_8 : i32
    %c1_i32_9 = arith.constant 1 : i32
    scf.for %arg9 = %c0_i32_7 to %10 step %c1_i32_9  : i32 {
      %c1_i32_15 = arith.constant 1 : i32
      %16 = arith.muli %arg9, %c1_i32_15 : i32
      %c0_i32_16 = arith.constant 0 : i32
      %17 = arith.addi %c0_i32_16, %16 : i32
      %c16_i32 = arith.constant 16 : i32
      %c0_i32_17 = arith.constant 0 : i32
      %18 = arith.cmpi eq, %c16_i32, %c0_i32_17 : i32
      %c1_i32_18 = arith.constant 1 : i32
      %19 = arith.select %18, %c1_i32_18, %c16_i32 : i32
      %20 = arith.remsi %17, %19 : i32
      %c0_i32_19 = arith.constant 0 : i32
      %21 = arith.cmpi ne, %20, %c0_i32_19 : i32
      %c0_i32_20 = arith.constant 0 : i32
      %22 = arith.cmpi slt, %20, %c0_i32_20 : i32
      %c0_i32_21 = arith.constant 0 : i32
      %23 = arith.cmpi slt, %19, %c0_i32_21 : i32
      %24 = arith.xori %22, %23 : i1
      %25 = arith.andi %24, %21 : i1
      %26 = arith.addi %20, %19 : i32
      %27 = arith.select %25, %26, %20 : i32
      %c0_i32_22 = arith.constant 0 : i32
      %c0_i32_23 = arith.constant 0 : i32
      %28 = tpu.memref_slice %arg5[%c0_i32_22, %c0_i32_23] : memref<16x32xf32, #tpu.memory_space<any>> -> memref<1x32xf32, #tpu.memory_space<any>>
      %c0_i32_24 = arith.constant 0 : i32
      %29 = tpu.memref_slice %arg7[%17, %c0_i32_24] : memref<64x32xf32, #tpu.memory_space<vmem>> -> memref<1x32xf32, #tpu.memory_space<vmem>>
      %30 = tpu.memref_slice %arg8[%27] : memref<16x!tpu.dma_semaphore, #tpu.memory_space<semaphore_mem>> -> memref<1x!tpu.dma_semaphore, #tpu.memory_space<semaphore_mem>>
      %31 = tpu.memref_squeeze %30 : memref<1x!tpu.dma_semaphore, #tpu.memory_space<semaphore_mem>> -> memref<!tpu.dma_semaphore, #tpu.memory_space<semaphore_mem>>
      tpu.wait_dma2 semaphore(%31 : memref<!tpu.dma_semaphore, #tpu.memory_space<semaphore_mem>>) src(%28 : memref<1x32xf32, #tpu.memory_space<any>>) dst(%29 : memref<1x32xf32, #tpu.memory_space<vmem>>)
    }
    %c64_i32_10 = arith.constant 64 : i32
    %c0_11 = arith.constant 0 : index
    %c0_12 = arith.constant 0 : index
    %11 = vector.load %arg7[%c0_11, %c0_12] : memref<64x32xf32, #tpu.memory_space<vmem>>, vector<64x32xf32>
    %12 = arith.addf %11, %9 : vector<64x32xf32>
    %cst = arith.constant 5.65685415 : f32
    %13 = vector.broadcast %cst : f32 to vector<64x32xf32>
    %14 = arith.mulf %12, %13 : vector<64x32xf32>
    %c0_13 = arith.constant 0 : index
    %c0_14 = arith.constant 0 : index
    %15 = vector.load %arg6[%c0_13, %c0_14] : memref<64x32xf32, #tpu.memory_space<vmem>>, vector<64x32xf32>
    tpu.vector_store %arg6[%c0_13, %c0_14], %14 {strides = array<i32>} : memref<64x32xf32, #tpu.memory_space<vmem>>, vector<64x32xf32>,
    return
  }
  func.func @transform_0(%arg0: i32, %arg1: memref<64xi32, #tpu.memory_space<smem>>) -> (i32, i32) {
    %c0_i32 = arith.constant 0 : i32
    %c0_i32_0 = arith.constant 0 : i32
    return %arg0, %c0_i32 : i32, i32
  }
  func.func @transform_1(%arg0: i32, %arg1: memref<64xi32, #tpu.memory_space<smem>>) -> (i32, i32) {
    %c0_i32 = arith.constant 0 : i32
    %c0_i32_0 = arith.constant 0 : i32
    %c0_i32_1 = arith.constant 0 : i32
    return %c0_i32, %c0_i32_0 : i32, i32
  }
  func.func @transform_2(%arg0: i32, %arg1: memref<64xi32, #tpu.memory_space<smem>>) -> (i32, i32) {
    %c0_i32 = arith.constant 0 : i32
    %c0_i32_0 = arith.constant 0 : i32
    %c0_i32_1 = arith.constant 0 : i32
    return %c0_i32, %c0_i32_0 : i32, i32
  }
  func.func @transform_4(%arg0: i32, %arg1: memref<64xi32, #tpu.memory_space<smem>>) -> (i32, i32) {
    %c0_i32 = arith.constant 0 : i32
    %c0_i32_0 = arith.constant 0 : i32
    return %arg0, %c0_i32 : i32, i32
  }
}

</mosaic_0001>

<llo_original>
// kernel: tpu_custom_call.1
$region0: #{tpu_custom_call.1}
  #allocation0 [shape = 'u32[]', space=smem, size = 0x4, offset = 0x4, fixed_abs, tag = 'smem constant byte address 0x4 - core index']
  #allocation1 [shape = 'u32[144,128]{1,0:T(1,128)}', space=vmem, size = 0x12000, scoped, tag = 'internal scratch']
  #allocation2 [shape = 'f32[64,32]{1,0:T(8,128)}', space=vmem, size = 0x8000, scoped, tag = 'scratch operand']
  #allocation3 [shape = 's32[16]{0}', space=sflag, size = 0x40, scoped, tag = 'scratch operand']
  #allocation4 [shape = 's32[1]{0}', space=sflag, size = 0x4, scoped, tag = 'scoped memory for tpu_custom_call.1']
  #allocation5 [shape = 'u8[512]{0}', space=smem, size = 0x200, scoped, tag = 'prefetched SMEM operand 0']
  #allocation6 [shape = 's32[]', space=sflag, size = 0x4, offset = 0, fixed_abs, tag = 'sflag constant byte address 0x0 - dummy sync flag']
  %s0 = inlined_call_operand.vmem [shape: s32[64], index: 0, kind: input, shape index: {}]
  %s1 = inlined_call_operand.vmem [shape: f32[64,1], index: 1, kind: input, shape index: {}]
  %s2 = inlined_call_operand.vmem [shape: f32[1,32], index: 2, kind: input, shape index: {}]
  %s3 = inlined_call_operand.vmem [shape: f32[1,32], index: 3, kind: input, shape index: {}]
  %s4 = inlined_call_operand.vmem [shape: f32[16,32], index: 4, kind: input, shape index: {}]
  %s5 = inlined_call_operand.vmem [shape: f32[64,32], index: 5, kind: output, shape index: {}]
  %s6 = sld [smem:[#allocation0]]
  $region66: #{tpu_custom_call.1} parent=0
    _
  %s8 = ssub.s32 1, %s6
  %s9 = scalar_select 0, %s8, %s6
  %s10 = sshll.u32 %s0, 4
  %s11 = int_to_ptr.vmem [resolvable:$true] %s10
  %13 = dma.vmem_to_smem %s11, 16, [#allocation5], [#allocation4]
  %14 = dma.done [#allocation4], 16
  %15 = sfence
  // Predicated region
  $region2: #{tpu_custom_call.1} parent=0 // pred_check
    _
  $region3: #{tpu_custom_call.1} parent=0 // pred_check_branch
    %17 = sbr.rel (0) target = $region5
  $region4: #{tpu_custom_call.1} parent=0 // pred_region
    _
  $region5: #{tpu_custom_call.1} parent=0 // pred_fallthru
    _
  // Predicated region
  $region6: #{tpu_custom_call.1} parent=0 // pred_check
    _
  $region7: #{tpu_custom_call.1} parent=0 // pred_check_branch
    %19 = sbr.rel (0) target = $region9
  $region8: #{tpu_custom_call.1} parent=0 // pred_region
    _
  $region9: #{tpu_custom_call.1} parent=0 // pred_fallthru
    _
  // Predicated region
  $region10: #{tpu_custom_call.1} parent=0 // pred_check
    _
  $region11: #{tpu_custom_call.1} parent=0 // pred_check_branch
    %21 = sbr.rel (0) target = $region13
  $region12: #{tpu_custom_call.1} parent=0 // pred_region
    _
  $region13: #{tpu_custom_call.1} parent=0 // pred_fallthru
    _
  %s22 = smul.u32 0, 64
  loop: start=0, step=1, limit=64
  $region14: #{tpu_custom_call.1} parent=0 // loop_pre_header
    _
  $region15: #{tpu_custom_call.1} parent=0 // loop_header
    %s24 = sphi 0, %s28
    %p25 = scmp.ge.s32.totalorder %s24, 64
  $region16: #{tpu_custom_call.1} parent=0 // loop_header_branch
    %27 = sbr.rel (%p25) target = $region20
  $region17: #{tpu_custom_call.1} parent=0 // loop_body
    %s29 = sadd.s32 %s22, %s24
    %s30 = sld [smem:[#allocation5 + %s29]]
    %p31 = scmp.lt.s32.totalorder %s24, 0
    %s32 = ssub.s32 0, %s24
    %s33 = scalar_select %p31, %s32, %s24
    %s34 = sand.u32 %s33, 15
    %s35 = ssub.s32 0, %s34
    %s36 = scalar_select %p31, %s35, %s34
    %p37 = scmp.ne.s32.totalorder %s36, 0
    %p38 = scmp.lt.s32.totalorder %s36, 0
    %p39 = pnand %p38, %p37
    %p40 = pneg %p39
    %s41 = sadd.s32 %s36, 16
    %s42 = scalar_select %p40, %s41, %s36
    %s43 = scalar_lea.vmem %s4, %s30
    %s44 = scalar_lea.vmem [#allocation2], %s24
    %s45 = scalar_lea.sflag [#allocation3], %s42
    %p47 = scmp.lt.u32.totalorder 1, 8
    %p48 = pneg %p47
    // Predicated region
    $region21: #{tpu_custom_call.1} parent=17 // pred_check
      _
    $region22: #{tpu_custom_call.1} parent=17 // pred_check_branch
      %50 = sbr.rel (%p47) target = $region24
    $region23: #{tpu_custom_call.1} parent=17 // pred_region
      %s65 = sand.u32 1, 7
      %p66 = scmp.eq.s32.totalorder %s65, 0
      %p67 = pneg %p66
      // Predicated region
      $region36: #{tpu_custom_call.1} parent=23 // pred_check
        _
      $region37: #{tpu_custom_call.1} parent=23 // pred_check_branch
        %69 = sbr.rel (%p66) target = $region39
      $region38: #{tpu_custom_call.1} parent=23 // pred_region
        %s70 = sand.u32 1, 7
        %s71 = ssub.s32 1, %s70
        %s72 = scalar_lea.vmem %s43, %s71
        %s73 = ssub.s32 1, %s70
        %s74 = scalar_lea.vmem %s44, %s73 [#allocation2]
        %s75 = sshllo.u32 0, %s70
        loop: start=0, step=1, limit=1
        $region40: #{tpu_custom_call.1} parent=38 // loop_pre_header
          _
        $region41: #{tpu_custom_call.1} parent=38 // loop_header
          %s77 = sphi 0, %s81
          %p78 = scmp.ge.s32.totalorder %s77, 1
          %s82 = sphi %s72, %s72
          %s83 = sphi %s74, %s74
        $region42: #{tpu_custom_call.1} parent=38 // loop_header_branch
          %80 = sbr.rel (%p78) target = $region46
        $region43: #{tpu_custom_call.1} parent=38 // loop_body
          %v84 = vld [vmem:[%s82] sm:%s75]
          %85 = vst [vmem:[%s83] sm:%s75] %v84
        $region44: #{tpu_custom_call.1} parent=38 // loop_footer
          %s81 = sadd.s32 1, %s77
        $region45: #{tpu_custom_call.1} parent=38 // loop_footer_branch
          %76 = sbr.rel target = $region41
        $region46: #{tpu_custom_call.1} parent=38 // loop_exit
          _
      $region39: #{tpu_custom_call.1} parent=23 // pred_fallthru
        _
    $region24: #{tpu_custom_call.1} parent=17 // pred_fallthru
      _
    // Predicated region
    $region25: #{tpu_custom_call.1} parent=17 // pred_check
      %p51 = pneg %p47
    $region26: #{tpu_custom_call.1} parent=17 // pred_check_branch
      %53 = sbr.rel (%p51) target = $region28
    $region27: #{tpu_custom_call.1} parent=17 // pred_region
      %s54 = sshllo.u32 0, 1
      loop: start=0, step=1, limit=1
      $region29: #{tpu_custom_call.1} parent=27 // loop_pre_header
        _
      $region30: #{tpu_custom_call.1} parent=27 // loop_header
        %s56 = sphi 0, %s60
        %p57 = scmp.ge.s32.totalorder %s56, 1
        %s61 = sphi %s43, %s43
        %s62 = sphi %s44, %s44
      $region31: #{tpu_custom_call.1} parent=27 // loop_header_branch
        %59 = sbr.rel (%p57) target = $region35
      $region32: #{tpu_custom_call.1} parent=27 // loop_body
        %v63 = vld [vmem:[%s61] sm:%s54]
        %64 = vst [vmem:[%s62] sm:%s54] %v63
      $region33: #{tpu_custom_call.1} parent=27 // loop_footer
        %s60 = sadd.s32 1, %s56
      $region34: #{tpu_custom_call.1} parent=27 // loop_footer_branch
        %55 = sbr.rel target = $region30
      $region35: #{tpu_custom_call.1} parent=27 // loop_exit
        _
    $region28: #{tpu_custom_call.1} parent=17 // pred_fallthru
      _
    // Predicated region
    $region47: #{tpu_custom_call.1} parent=17 // pred_check
      _
    $region48: #{tpu_custom_call.1} parent=17 // pred_check_branch
      %88 = sbr.rel (0) target = $region50
    $region49: #{tpu_custom_call.1} parent=17 // pred_region
      %89 = vsyncadd %s45, 16
    $region50: #{tpu_custom_call.1} parent=17 // pred_fallthru
      _
  $region18: #{tpu_custom_call.1} parent=0 // loop_footer
    %s28 = sadd.s32 1, %s24
  $region19: #{tpu_custom_call.1} parent=0 // loop_footer_branch
    %23 = sbr.rel target = $region15
  $region20: #{tpu_custom_call.1} parent=0 // loop_exit
    _
  %v90 = vld [vmem:[%s1] sm:$0xff]
  %v91 = vld [vmem:[%s1 + $0x8] sm:$0xff]
  %v92 = vld [vmem:[%s1 + $0x10] sm:$0xff]
  %v93 = vld [vmem:[%s1 + $0x18] sm:$0xff]
  %v94 = vld [vmem:[%s1 + $0x20] sm:$0xff]
  %v95 = vld [vmem:[%s1 + $0x28] sm:$0xff]
  %v96 = vld [vmem:[%s1 + $0x30] sm:$0xff]
  %v97 = vld [vmem:[%s1 + $0x38] sm:$0xff]
  %v98 = vld [vmem:[%s2] sm:$0x1]
  %100 = vset.pattern.permute.xlu0 0
  %101 = vperm.xlu0 %100, %v90
  %v102 = vpop.permute.xlu0 %101
  %105 = vset.pattern.permute.xlu0 0
  %106 = vperm.xlu0 %105, %v91
  %v107 = vpop.permute.xlu0 %106
  %110 = vset.pattern.permute.xlu0 0
  %111 = vperm.xlu0 %110, %v92
  %v112 = vpop.permute.xlu0 %111
  %115 = vset.pattern.permute.xlu0 0
  %116 = vperm.xlu0 %115, %v93
  %v117 = vpop.permute.xlu0 %116
  %120 = vset.pattern.permute.xlu0 0
  %121 = vperm.xlu0 %120, %v94
  %v122 = vpop.permute.xlu0 %121
  %125 = vset.pattern.permute.xlu0 0
  %126 = vperm.xlu0 %125, %v95
  %v127 = vpop.permute.xlu0 %126
  %130 = vset.pattern.permute.xlu0 0
  %131 = vperm.xlu0 %130, %v96
  %v132 = vpop.permute.xlu0 %131
  %135 = vset.pattern.permute.xlu0 0
  %136 = vperm.xlu0 %135, %v97
  %v137 = vpop.permute.xlu0 %136
  %v140 = vlaneseq
  %v141 = vshrl.u32 %v140, 7
  %v142 = vsub.s32 0, %v141
  %v143 = vrot.slane %v98, %v142
  %v145 = vmul.f32 %v102, %v143
  %v146 = vmul.f32 %v107, %v143
  %v147 = vmul.f32 %v112, %v143
  %v148 = vmul.f32 %v117, %v143
  %v149 = vmul.f32 %v122, %v143
  %v150 = vmul.f32 %v127, %v143
  %v151 = vmul.f32 %v132, %v143
  %v152 = vmul.f32 %v137, %v143
  %v153 = vld [vmem:[%s3] sm:$0x1]
  %v155 = vlaneseq
  %v156 = vshrl.u32 %v155, 7
  %v157 = vsub.s32 0, %v156
  %v158 = vrot.slane %v153, %v157
  %v160 = vadd.f32 %v145, %v158
  %v161 = vadd.f32 %v146, %v158
  %v162 = vadd.f32 %v147, %v158
  %v163 = vadd.f32 %v148, %v158
  %v164 = vadd.f32 %v149, %v158
  %v165 = vadd.f32 %v150, %v158
  %v166 = vadd.f32 %v151, %v158
  %v167 = vadd.f32 %v152, %v158
  loop: start=0, step=1, limit=64
  $region51: #{tpu_custom_call.1} parent=0 // loop_pre_header
    _
  $region52: #{tpu_custom_call.1} parent=0 // loop_header
    %s169 = sphi 0, %s173
    %p170 = scmp.ge.s32.totalorder %s169, 64
  $region53: #{tpu_custom_call.1} parent=0 // loop_header_branch
    %172 = sbr.rel (%p170) target = $region57
  $region54: #{tpu_custom_call.1} parent=0 // loop_body
    %p174 = scmp.lt.s32.totalorder %s169, 0
    %s175 = ssub.s32 0, %s169
    %s176 = scalar_select %p174, %s175, %s169
    %s177 = sand.u32 %s176, 15
    %s178 = ssub.s32 0, %s177
    %s179 = scalar_select %p174, %s178, %s177
    %p180 = scmp.ne.s32.totalorder %s179, 0
    %p181 = scmp.lt.s32.totalorder %s179, 0
    %p182 = pnand %p181, %p180
    %p183 = pneg %p182
    %s184 = sadd.s32 %s179, 16
    %s185 = scalar_select %p183, %s184, %s179
    %s186 = scalar_lea.sflag [#allocation3], %s185
    %s187 = smul.u32 1, 1
    %s188 = sshll.u32 %s187, 4
    %189 = dma.done %s186, %s188
  $region55: #{tpu_custom_call.1} parent=0 // loop_footer
    %s173 = sadd.s32 1, %s169
  $region56: #{tpu_custom_call.1} parent=0 // loop_footer_branch
    %168 = sbr.rel target = $region52
  $region57: #{tpu_custom_call.1} parent=0 // loop_exit
    _
  %v190 = vld [vmem:[#allocation2] sm:$0xff]
  %v191 = vld [vmem:[#allocation2 + $0x8] sm:$0xff]
  %v192 = vld [vmem:[#allocation2 + $0x10] sm:$0xff]
  %v193 = vld [vmem:[#allocation2 + $0x18] sm:$0xff]
  %v194 = vld [vmem:[#allocation2 + $0x20] sm:$0xff]
  %v195 = vld [vmem:[#allocation2 + $0x28] sm:$0xff]
  %v196 = vld [vmem:[#allocation2 + $0x30] sm:$0xff]
  %v197 = vld [vmem:[#allocation2 + $0x38] sm:$0xff]
  %v198 = vadd.f32 %v190, %v160
  %v199 = vadd.f32 %v191, %v161
  %v200 = vadd.f32 %v192, %v162
  %v201 = vadd.f32 %v193, %v163
  %v202 = vadd.f32 %v194, %v164
  %v203 = vadd.f32 %v195, %v165
  %v204 = vadd.f32 %v196, %v166
  %v205 = vadd.f32 %v197, %v167
  %v206 = vmul.f32 %v198, 5.656854
  %v207 = vmul.f32 %v199, 5.656854
  %v208 = vmul.f32 %v200, 5.656854
  %v209 = vmul.f32 %v201, 5.656854
  %v210 = vmul.f32 %v202, 5.656854
  %v211 = vmul.f32 %v203, 5.656854
  %v212 = vmul.f32 %v204, 5.656854
  %v213 = vmul.f32 %v205, 5.656854
  %vm214 = vcmask 261120
  %215 = vst.msk [vmem:[%s5] sm:$0xff] %vm214, %v206
  %216 = vst.msk [vmem:[%s5 + $0x8] sm:$0xff] %vm214, %v207
  %217 = vst.msk [vmem:[%s5 + $0x10] sm:$0xff] %vm214, %v208
  %218 = vst.msk [vmem:[%s5 + $0x18] sm:$0xff] %vm214, %v209
  %219 = vst.msk [vmem:[%s5 + $0x20] sm:$0xff] %vm214, %v210
  %220 = vst.msk [vmem:[%s5 + $0x28] sm:$0xff] %vm214, %v211
  %221 = vst.msk [vmem:[%s5 + $0x30] sm:$0xff] %vm214, %v212
  %222 = vst.msk [vmem:[%s5 + $0x38] sm:$0xff] %vm214, %v213
  // Predicated region
  $region58: #{tpu_custom_call.1} parent=0 // pred_check
    _
  $region59: #{tpu_custom_call.1} parent=0 // pred_check_branch
    %224 = sbr.rel (0) target = $region61
  $region60: #{tpu_custom_call.1} parent=0 // pred_region
    _
  $region61: #{tpu_custom_call.1} parent=0 // pred_fallthru
    _
  // Predicated region
  $region62: #{tpu_custom_call.1} parent=0 // pred_check
    _
  $region63: #{tpu_custom_call.1} parent=0 // pred_check_branch
    %226 = sbr.rel (0) target = $region65
  $region64: #{tpu_custom_call.1} parent=0 // pred_region
    _
  $region65: #{tpu_custom_call.1} parent=0 // pred_fallthru
    _
  %227 = vsyncmov [#allocation3]
  %s228 = vpop.sfrf %227
  %p229 = scmp.eq.s32.totalorder %s228, 0
  %p230 = pneg %p229
  %232 = shalt.err (%p230)
  %s233 = scalar_lea.sflag [#allocation3], 1
  %234 = vsyncmov %s233
  %s235 = vpop.sfrf %234
  %p236 = scmp.eq.s32.totalorder %s235, 0
  %p237 = pneg %p236
  %239 = shalt.err (%p237)
  %s240 = scalar_lea.sflag [#allocation3], 2
  %241 = vsyncmov %s240
  %s242 = vpop.sfrf %241
  %p243 = scmp.eq.s32.totalorder %s242, 0
  %p244 = pneg %p243
  %246 = shalt.err (%p244)
  %s247 = scalar_lea.sflag [#allocation3], 3
  %248 = vsyncmov %s247
  %s249 = vpop.sfrf %248
  %p250 = scmp.eq.s32.totalorder %s249, 0
  %p251 = pneg %p250
  %253 = shalt.err (%p251)
  %s254 = scalar_lea.sflag [#allocation3], 4
  %255 = vsyncmov %s254
  %s256 = vpop.sfrf %255
  %p257 = scmp.eq.s32.totalorder %s256, 0
  %p258 = pneg %p257
  %260 = shalt.err (%p258)
  %s261 = scalar_lea.sflag [#allocation3], 5
  %262 = vsyncmov %s261
  %s263 = vpop.sfrf %262
  %p264 = scmp.eq.s32.totalorder %s263, 0
  %p265 = pneg %p264
  %267 = shalt.err (%p265)
  %s268 = scalar_lea.sflag [#allocation3], 6
  %269 = vsyncmov %s268
  %s270 = vpop.sfrf %269
  %p271 = scmp.eq.s32.totalorder %s270, 0
  %p272 = pneg %p271
  %274 = shalt.err (%p272)
  %s275 = scalar_lea.sflag [#allocation3], 7
  %276 = vsyncmov %s275
  %s277 = vpop.sfrf %276
  %p278 = scmp.eq.s32.totalorder %s277, 0
  %p279 = pneg %p278
  %281 = shalt.err (%p279)
  %s282 = scalar_lea.sflag [#allocation3], 8
  %283 = vsyncmov %s282
  %s284 = vpop.sfrf %283
  %p285 = scmp.eq.s32.totalorder %s284, 0
  %p286 = pneg %p285
  %288 = shalt.err (%p286)
  %s289 = scalar_lea.sflag [#allocation3], 9
  %290 = vsyncmov %s289
  %s291 = vpop.sfrf %290
  %p292 = scmp.eq.s32.totalorder %s291, 0
  %p293 = pneg %p292
  %295 = shalt.err (%p293)
  %s296 = scalar_lea.sflag [#allocation3], 10
  %297 = vsyncmov %s296
  %s298 = vpop.sfrf %297
  %p299 = scmp.eq.s32.totalorder %s298, 0
  %p300 = pneg %p299
  %302 = shalt.err (%p300)
  %s303 = scalar_lea.sflag [#allocation3], 11
  %304 = vsyncmov %s303
  %s305 = vpop.sfrf %304
  %p306 = scmp.eq.s32.totalorder %s305, 0
  %p307 = pneg %p306
  %309 = shalt.err (%p307)
  %s310 = scalar_lea.sflag [#allocation3], 12
  %311 = vsyncmov %s310
  %s312 = vpop.sfrf %311
  %p313 = scmp.eq.s32.totalorder %s312, 0
  %p314 = pneg %p313
  %316 = shalt.err (%p314)
  %s317 = scalar_lea.sflag [#allocation3], 13
  %318 = vsyncmov %s317
  %s319 = vpop.sfrf %318
  %p320 = scmp.eq.s32.totalorder %s319, 0
  %p321 = pneg %p320
  %323 = shalt.err (%p321)
  %s324 = scalar_lea.sflag [#allocation3], 14
  %325 = vsyncmov %s324
  %s326 = vpop.sfrf %325
  %p327 = scmp.eq.s32.totalorder %s326, 0
  %p328 = pneg %p327
  %330 = shalt.err (%p328)
  %s331 = scalar_lea.sflag [#allocation3], 15
  %332 = vsyncmov %s331
  %s333 = vpop.sfrf %332
  %p334 = scmp.eq.s32.totalorder %s333, 0
  %p335 = pneg %p334
  %337 = shalt.err (%p335)

</llo_original>
